<compile_context>
chip_gen: v5e
topology: v5e:2x2
jax: 0.10.0
libtpu: 0.0.40
codegen_flags: <defaults>
</compile_context>

<pallas_src>
import functools

import jax
import jax.numpy as jnp
from jax.experimental import pallas as pl
from jax.experimental.pallas import tpu as pltpu

LANE = 128            # lane width: pad feature dims to a multiple of this
NODE_ALIGN = 128      # pad node count to a multiple of this
VMEM_LIMIT = 32 * 1024 * 1024   # safe on v5e/v6e (128 MiB) and v7x (64 MiB physical)


def _round_up(x, m):
    return ((x + m - 1) // m) * m


def _pick_tile(n, candidates):
    for c in candidates:
        if n % c == 0:
            return c
    return n


# --------------------------------------------------------------------------
# Kernel 1: neighbor projection    P = X @ W_l    (bf16 output)
# --------------------------------------------------------------------------
def _proj_kernel(x_ref, wl_ref, p_ref):
    p = jnp.dot(x_ref[...], wl_ref[...], preferred_element_type=jnp.float32)
    p_ref[...] = p.astype(p_ref.dtype)   # bf16 for the big A @ P matmul


def project_neighbors(x, w_l):
    """x:[Np,Fin_p] f32 (padded), w_l:[Fin_p,Fout_p] f32 (padded) -> P bf16."""
    n_pad, fin_p = x.shape
    fout_p = w_l.shape[1]
    tr = _pick_tile(n_pad, (512, 256, 128))
    grid = (n_pad // tr,)

    flops = 2 * n_pad * fin_p * fout_p
    bytes_accessed = 4 * n_pad * fin_p + 4 * fin_p * fout_p + 2 * n_pad * fout_p

    return pl.pallas_call(
        _proj_kernel,
        out_shape=jax.ShapeDtypeStruct((n_pad, fout_p), jnp.bfloat16),
        grid_spec=pltpu.PrefetchScalarGridSpec(
            num_scalar_prefetch=0,
            grid=grid,
            in_specs=[
                pl.BlockSpec((tr, fin_p), lambda i: (i, 0)),
                pl.BlockSpec((fin_p, fout_p), lambda i: (0, 0)),
            ],
            out_specs=pl.BlockSpec((tr, fout_p), lambda i: (i, 0)),
        ),
        compiler_params=pltpu.CompilerParams(
            dimension_semantics=("parallel",),
            vmem_limit_bytes=VMEM_LIMIT,
        ),
        cost_estimate=pl.CostEstimate(
            flops=int(flops), transcendentals=0, bytes_accessed=int(bytes_accessed)),
    )(x, w_l)


# --------------------------------------------------------------------------
# Kernel 2: fused aggregation    out = A @ P + (X @ W_r + b)   (+ optional ReLU)
# --------------------------------------------------------------------------
def _agg_kernel(a_ref, p_ref, x_ref, wr_ref, b_ref, o_ref, acc_ref, *, apply_relu):
    k = pl.program_id(1)

    @pl.when(k == 0)
    def _():
        acc_ref[...] = jnp.zeros_like(acc_ref)

    acc_ref[...] += jnp.dot(a_ref[...], p_ref[...],
                            preferred_element_type=jnp.float32)

    @pl.when(k == pl.num_programs(1) - 1)
    def _():
        # Self term computed here -> the f32 Q tensor never touches HBM.
        q = jnp.dot(x_ref[...], wr_ref[...],
                    preferred_element_type=jnp.float32) + b_ref[...]
        out = acc_ref[...] + q                   # f32 epilogue (v5e-friendly)
        if apply_relu:
            out = jnp.maximum(out, 0.0)
        o_ref[...] = out.astype(o_ref.dtype)


def aggregate(a, p, x, w_r, b, *, apply_relu):
    """a:[Np,Np] bf16, p:[Np,Fout_p] bf16, x:[Np,Fin_p] f32, w_r:[Fin_p,Fout_p] f32."""
    n_pad = a.shape[0]
    fin_p = x.shape[1]
    fout_p = p.shape[1]
    tm = _pick_tile(n_pad, (512, 256, 128))          # dst-node tile (acc rows)
    tk = _pick_tile(n_pad, (1024, 512, 256, 128))    # src-node / reduction tile
    grid = (n_pad // tm, n_pad // tk)

    flops = 2 * n_pad * n_pad * fout_p + 2 * n_pad * fin_p * fout_p
    bytes_accessed = (2 * n_pad * n_pad                         # A (bf16, once)
                      + (n_pad // tm) * 2 * n_pad * fout_p      # P (bf16, per dst tile)
                      + 4 * n_pad * fin_p                       # X (f32, once)
                      + 4 * fin_p * fout_p + 4 * fout_p         # W_r, b
                      + 4 * n_pad * fout_p)                     # out (f32)

    kernel = functools.partial(_agg_kernel, apply_relu=apply_relu)
    return pl.pallas_call(
        kernel,
        out_shape=jax.ShapeDtypeStruct((n_pad, fout_p), jnp.float32),
        grid_spec=pltpu.PrefetchScalarGridSpec(
            num_scalar_prefetch=0,
            grid=grid,
            in_specs=[
                pl.BlockSpec((tm, tk), lambda i, k: (i, k)),        # A tile
                pl.BlockSpec((tk, fout_p), lambda i, k: (k, 0)),    # P tile
                pl.BlockSpec((tm, fin_p), lambda i, k: (i, 0)),     # X dst tile
                pl.BlockSpec((fin_p, fout_p), lambda i, k: (0, 0)), # W_r (resident)
                pl.BlockSpec((1, fout_p), lambda i, k: (0, 0)),     # bias (resident)
            ],
            out_specs=pl.BlockSpec((tm, fout_p), lambda i, k: (i, 0)),
            scratch_shapes=[pltpu.VMEM((tm, fout_p), jnp.float32)],
        ),
        compiler_params=pltpu.CompilerParams(
            dimension_semantics=("parallel", "arbitrary"),   # dst tiles shard across v7x's 2 TCs
            vmem_limit_bytes=VMEM_LIMIT,
        ),
        cost_estimate=pl.CostEstimate(
            flops=int(flops), transcendentals=0, bytes_accessed=int(bytes_accessed)),
    )(a, p, x, w_r, b)


# --------------------------------------------------------------------------
# Glue: adjacency normalization, parameter init, multi-layer forward
# --------------------------------------------------------------------------
def build_mean_adj(edge_index, num_nodes, num_nodes_padded):
    """Dense mean-aggregation matrix A[dst, src] (PyG SAGEConv 'mean'), bf16, padded."""
    src = edge_index[0]
    dst = edge_index[1]
    a = jnp.zeros((num_nodes, num_nodes), jnp.float32).at[dst, src].add(1.0)
    deg = jnp.sum(a, axis=-1, keepdims=True)
    a = a / jnp.maximum(deg, 1.0)
    pad = num_nodes_padded - num_nodes
    a = jnp.pad(a, ((0, pad), (0, pad)))
    return a.astype(jnp.bfloat16)


def init_sage_params(key, layer_dims):
    """Deterministic glorot-style init for each SAGEConv (lin_l, lin_r, bias)."""
    params = []
    for fin, fout in zip(layer_dims[:-1], layer_dims[1:]):
        key, k1, k2 = jax.random.split(key, 3)
        scale = jnp.sqrt(2.0 / (fin + fout)).astype(jnp.float32)
        w_l = jax.random.normal(k1, (fin, fout), jnp.float32) * scale
        w_r = jax.random.normal(k2, (fin, fout), jnp.float32) * scale
        b = jnp.zeros((1, fout), jnp.float32)
        params.append((w_l, w_r, b))
    return params


def sage_forward(params, x, edge_index):
    """SAGE.forward: ReLU (+dropout=identity in eval) between layers, none at end."""
    n, fin = x.shape
    n_pad = _round_up(n, NODE_ALIGN)
    a = build_mean_adj(edge_index, n, n_pad)

    fin_p = _round_up(fin, LANE)
    z = jnp.pad(x, ((0, n_pad - n), (0, fin_p - fin))).astype(jnp.float32)

    num_layers = len(params)
    fout_last = params[-1][0].shape[1]
    for i, (w_l, w_r, b) in enumerate(params):
        f_in, f_out = w_l.shape
        f_in_p = _round_up(f_in, LANE)
        f_out_p = _round_up(f_out, LANE)
        w_l_p = jnp.pad(w_l, ((0, f_in_p - f_in), (0, f_out_p - f_out)))
        w_r_p = jnp.pad(w_r, ((0, f_in_p - f_in), (0, f_out_p - f_out)))
        b_p = jnp.pad(b, ((0, 0), (0, f_out_p - f_out)))

        p_bf16 = project_neighbors(z, w_l_p)
        z = aggregate(a, p_bf16, z, w_r_p, b_p, apply_relu=(i < num_layers - 1))
        # F.dropout(z, p, training=False) == identity (eval semantics)

    return z[:n, :fout_last]


# --------------------------------------------------------------------------
if __name__ == "__main__":
    # args: layer_num=3, hidden_dim=32, dropout=0.5 ; dim_in=16, dim_out=8
    N, E = 8, 16
    dim_in, hidden_dim, dim_out, layer_num = 16, 32, 8, 3
    layer_dims = [dim_in] + [hidden_dim] * (layer_num - 1) + [dim_out]

    key = jax.random.PRNGKey(0)
    kx, ke, kp = jax.random.split(key, 3)
    x = jax.random.normal(kx, (N, dim_in), jnp.float32)
    edge_index = jax.random.randint(ke, (2, E), 0, N, dtype=jnp.int32)

    params = init_sage_params(kp, layer_dims)

    fwd = jax.jit(sage_forward)           # fuse host-side padding / adjacency build
    out = fwd(params, x, edge_index)
    out = jax.block_until_ready(out)
    assert out.shape == (N, dim_out), out.shape
    assert bool(jnp.all(jnp.isfinite(out)))
    print("KERNEL_OK")
</pallas_src>

<mosaic_0001>
module attributes {stable_mosaic.version = 11 : i64} {
  func.func @_agg_kernel(%arg0: i32, %arg1: i32, %arg2: memref<128x128xbf16, #tpu.memory_space<vmem>>, %arg3: memref<128x128xbf16, #tpu.memory_space<vmem>>, %arg4: memref<128x128xf32, #tpu.memory_space<vmem>>, %arg5: memref<128x128xf32, #tpu.memory_space<vmem>>, %arg6: memref<1x128xf32, #tpu.memory_space<vmem>>, %arg7: memref<128x128xf32, #tpu.memory_space<vmem>>, %arg8: memref<128x128xf32, #tpu.memory_space<vmem>>) attributes {dimension_semantics = [#tpu.dimension_semantics<parallel>, #tpu.dimension_semantics<arbitrary>], iteration_bounds = array<i64: 1, 1>, scalar_prefetch = 0 : i64, scratch_operands = 1 : i64, tpu.core_type = #tpu.core_type<tc>, window_params = [{transform_indices = @transform_0, window_bounds = array<i64: 128, 128>}, {transform_indices = @transform_1, window_bounds = array<i64: 128, 128>}, {transform_indices = @transform_2, window_bounds = array<i64: 128, 128>}, {pipeline_mode = #tpu.pipeline_mode<synchronous>, transform_indices = @transform_3, window_bounds = array<i64: 128, 128>}, {pipeline_mode = #tpu.pipeline_mode<synchronous>, transform_indices = @transform_4, window_bounds = array<i64: 1, 128>}, {transform_indices = @transform_5, window_bounds = array<i64: 128, 128>}]} {
    %c0_i32 = arith.constant 0 : i32
    %0 = arith.cmpi eq, %arg1, %c0_i32 : i32
    %1 = arith.extui %0 : i1 to i32
    %c0_i32_0 = arith.constant 0 : i32
    %2 = arith.cmpi ne, %1, %c0_i32_0 : i32
    scf.if %2 {
      %cst_10 = arith.constant 0.000000e+00 : f32
      %12 = vector.broadcast %cst_10 : f32 to vector<128x128xf32>
      %c0_11 = arith.constant 0 : index
      %c0_12 = arith.constant 0 : index
      %13 = vector.load %arg8[%c0_11, %c0_12] : memref<128x128xf32, #tpu.memory_space<vmem>>, vector<128x128xf32>
      tpu.vector_store %arg8[%c0_11, %c0_12], %12 {strides = array<i32>} : memref<128x128xf32, #tpu.memory_space<vmem>>, vector<128x128xf32>,
    } else {
    }
    %c0 = arith.constant 0 : index
    %c0_1 = arith.constant 0 : index
    %3 = vector.load %arg8[%c0, %c0_1] : memref<128x128xf32, #tpu.memory_space<vmem>>, vector<128x128xf32>
    %c0_2 = arith.constant 0 : index
    %c0_3 = arith.constant 0 : index
    %4 = vector.load %arg2[%c0_2, %c0_3] : memref<128x128xbf16, #tpu.memory_space<vmem>>, vector<128x128xbf16>
    %c0_4 = arith.constant 0 : index
    %c0_5 = arith.constant 0 : index
    %5 = vector.load %arg3[%c0_4, %c0_5] : memref<128x128xbf16, #tpu.memory_space<vmem>>, vector<128x128xbf16>
    %cst = arith.constant dense<0.000000e+00> : vector<128x128xf32>
    %6 = tpu.matmul %4, %5, %cst {dimension_numbers = #tpu.dot_dimension_numbers<[1], [0], [0], [1], [0, 0, 1, 1], [], []>} : vector<128x128xbf16>, vector<128x128xbf16>, vector<128x128xf32> -> vector<128x128xf32>
    %7 = arith.addf %3, %6 : vector<128x128xf32>
    %c0_6 = arith.constant 0 : index
    %c0_7 = arith.constant 0 : index
    %8 = vector.load %arg8[%c0_6, %c0_7] : memref<128x128xf32, #tpu.memory_space<vmem>>, vector<128x128xf32>
    tpu.vector_store %arg8[%c0_6, %c0_7], %7 {strides = array<i32>} : memref<128x128xf32, #tpu.memory_space<vmem>>, vector<128x128xf32>,
    %c0_i32_8 = arith.constant 0 : i32
    %9 = arith.cmpi eq, %arg1, %c0_i32_8 : i32
    %10 = arith.extui %9 : i1 to i32
    %c0_i32_9 = arith.constant 0 : i32
    %11 = arith.cmpi ne, %10, %c0_i32_9 : i32
    scf.if %11 {
      %c0_10 = arith.constant 0 : index
      %c0_11 = arith.constant 0 : index
      %12 = vector.load %arg4[%c0_10, %c0_11] : memref<128x128xf32, #tpu.memory_space<vmem>>, vector<128x128xf32>
      %c0_12 = arith.constant 0 : index
      %c0_13 = arith.constant 0 : index
      %13 = vector.load %arg5[%c0_12, %c0_13] : memref<128x128xf32, #tpu.memory_space<vmem>>, vector<128x128xf32>
      %cst_14 = arith.constant dense<0.000000e+00> : vector<128x128xf32>
      %14 = tpu.matmul %12, %13, %cst_14 {dimension_numbers = #tpu.dot_dimension_numbers<[1], [0], [0], [1], [0, 0, 1, 1], [], []>} : vector<128x128xf32>, vector<128x128xf32>, vector<128x128xf32> -> vector<128x128xf32>
      %c0_15 = arith.constant 0 : index
      %c0_16 = arith.constant 0 : index
      %15 = vector.load %arg6[%c0_15, %c0_16] : memref<1x128xf32, #tpu.memory_space<vmem>>, vector<1x128xf32>
      %16 = vector.broadcast %15 : vector<1x128xf32> to vector<128x128xf32>
      %17 = arith.addf %14, %16 : vector<128x128xf32>
      %c0_17 = arith.constant 0 : index
      %c0_18 = arith.constant 0 : index
      %18 = vector.load %arg8[%c0_17, %c0_18] : memref<128x128xf32, #tpu.memory_space<vmem>>, vector<128x128xf32>
      %19 = arith.addf %18, %17 : vector<128x128xf32>
      %cst_19 = arith.constant 0.000000e+00 : f32
      %20 = vector.broadcast %cst_19 : f32 to vector<128x128xf32>
      %21 = arith.maximumf %19, %20 : vector<128x128xf32>
      %c0_20 = arith.constant 0 : index
      %c0_21 = arith.constant 0 : index
      %22 = vector.load %arg7[%c0_20, %c0_21] : memref<128x128xf32, #tpu.memory_space<vmem>>, vector<128x128xf32>
      tpu.vector_store %arg7[%c0_20, %c0_21], %21 {strides = array<i32>} : memref<128x128xf32, #tpu.memory_space<vmem>>, vector<128x128xf32>,
    } else {
    }
    return
  }
  func.func @transform_0(%arg0: i32, %arg1: i32) -> (i32, i32) {
    %c0_i32 = arith.constant 0 : i32
    return %arg0, %arg1 : i32, i32
  }
  func.func @transform_1(%arg0: i32, %arg1: i32) -> (i32, i32) {
    %c0_i32 = arith.constant 0 : i32
    %c0_i32_0 = arith.constant 0 : i32
    return %arg1, %c0_i32 : i32, i32
  }
  func.func @transform_2(%arg0: i32, %arg1: i32) -> (i32, i32) {
    %c0_i32 = arith.constant 0 : i32
    %c0_i32_0 = arith.constant 0 : i32
    return %arg0, %c0_i32 : i32, i32
  }
  func.func @transform_3(%arg0: i32, %arg1: i32) -> (i32, i32) {
    %c0_i32 = arith.constant 0 : i32
    %c0_i32_0 = arith.constant 0 : i32
    %c0_i32_1 = arith.constant 0 : i32
    return %c0_i32, %c0_i32_0 : i32, i32
  }
  func.func @transform_4(%arg0: i32, %arg1: i32) -> (i32, i32) {
    %c0_i32 = arith.constant 0 : i32
    %c0_i32_0 = arith.constant 0 : i32
    %c0_i32_1 = arith.constant 0 : i32
    return %c0_i32, %c0_i32_0 : i32, i32
  }
  func.func @transform_5(%arg0: i32, %arg1: i32) -> (i32, i32) {
    %c0_i32 = arith.constant 0 : i32
    %c0_i32_0 = arith.constant 0 : i32
    return %arg0, %c0_i32 : i32, i32
  }
}

module attributes {stable_mosaic.version = 11 : i64} {
  func.func @_proj_kernel(%arg0: i32, %arg1: memref<128x128xf32, #tpu.memory_space<vmem>>, %arg2: memref<128x128xf32, #tpu.memory_space<vmem>>, %arg3: memref<128x128xbf16, #tpu.memory_space<vmem>>) attributes {dimension_semantics = [#tpu.dimension_semantics<parallel>], iteration_bounds = array<i64: 1>, scalar_prefetch = 0 : i64, scratch_operands = 0 : i64, tpu.core_type = #tpu.core_type<tc>, window_params = [{transform_indices = @transform_0, window_bounds = array<i64: 128, 128>}, {pipeline_mode = #tpu.pipeline_mode<synchronous>, transform_indices = @transform_1, window_bounds = array<i64: 128, 128>}, {transform_indices = @transform_2, window_bounds = array<i64: 128, 128>}]} {
    %c0 = arith.constant 0 : index
    %c0_0 = arith.constant 0 : index
    %0 = vector.load %arg1[%c0, %c0_0] : memref<128x128xf32, #tpu.memory_space<vmem>>, vector<128x128xf32>
    %c0_1 = arith.constant 0 : index
    %c0_2 = arith.constant 0 : index
    %1 = vector.load %arg2[%c0_1, %c0_2] : memref<128x128xf32, #tpu.memory_space<vmem>>, vector<128x128xf32>
    %cst = arith.constant dense<0.000000e+00> : vector<128x128xf32>
    %2 = tpu.matmul %0, %1, %cst {dimension_numbers = #tpu.dot_dimension_numbers<[1], [0], [0], [1], [0, 0, 1, 1], [], []>} : vector<128x128xf32>, vector<128x128xf32>, vector<128x128xf32> -> vector<128x128xf32>
    %3 = arith.truncf %2 : vector<128x128xf32> to vector<128x128xbf16>
    %c0_3 = arith.constant 0 : index
    %c0_4 = arith.constant 0 : index
    %4 = vector.load %arg3[%c0_3, %c0_4] : memref<128x128xbf16, #tpu.memory_space<vmem>>, vector<128x128xbf16>
    tpu.vector_store %arg3[%c0_3, %c0_4], %3 {strides = array<i32>} : memref<128x128xbf16, #tpu.memory_space<vmem>>, vector<128x128xbf16>,
    return
  }
  func.func @transform_0(%arg0: i32) -> (i32, i32) {
    %c0_i32 = arith.constant 0 : i32
    %c0_i32_0 = arith.constant 0 : i32
    return %arg0, %c0_i32 : i32, i32
  }
  func.func @transform_1(%arg0: i32) -> (i32, i32) {
    %c0_i32 = arith.constant 0 : i32
    %c0_i32_0 = arith.constant 0 : i32
    %c0_i32_1 = arith.constant 0 : i32
    return %c0_i32, %c0_i32_0 : i32, i32
  }
  func.func @transform_2(%arg0: i32) -> (i32, i32) {
    %c0_i32 = arith.constant 0 : i32
    %c0_i32_0 = arith.constant 0 : i32
    return %arg0, %c0_i32 : i32, i32
  }
}

module attributes {stable_mosaic.version = 11 : i64} {
  func.func @_agg_kernel(%arg0: i32, %arg1: i32, %arg2: memref<128x128xbf16, #tpu.memory_space<vmem>>, %arg3: memref<128x128xbf16, #tpu.memory_space<vmem>>, %arg4: memref<128x128xf32, #tpu.memory_space<vmem>>, %arg5: memref<128x128xf32, #tpu.memory_space<vmem>>, %arg6: memref<1x128xf32, #tpu.memory_space<vmem>>, %arg7: memref<128x128xf32, #tpu.memory_space<vmem>>, %arg8: memref<128x128xf32, #tpu.memory_space<vmem>>) attributes {dimension_semantics = [#tpu.dimension_semantics<parallel>, #tpu.dimension_semantics<arbitrary>], iteration_bounds = array<i64: 1, 1>, scalar_prefetch = 0 : i64, scratch_operands = 1 : i64, tpu.core_type = #tpu.core_type<tc>, window_params = [{transform_indices = @transform_0, window_bounds = array<i64: 128, 128>}, {transform_indices = @transform_1, window_bounds = array<i64: 128, 128>}, {transform_indices = @transform_2, window_bounds = array<i64: 128, 128>}, {pipeline_mode = #tpu.pipeline_mode<synchronous>, transform_indices = @transform_3, window_bounds = array<i64: 128, 128>}, {pipeline_mode = #tpu.pipeline_mode<synchronous>, transform_indices = @transform_4, window_bounds = array<i64: 1, 128>}, {transform_indices = @transform_5, window_bounds = array<i64: 128, 128>}]} {
    %c0_i32 = arith.constant 0 : i32
    %0 = arith.cmpi eq, %arg1, %c0_i32 : i32
    %1 = arith.extui %0 : i1 to i32
    %c0_i32_0 = arith.constant 0 : i32
    %2 = arith.cmpi ne, %1, %c0_i32_0 : i32
    scf.if %2 {
      %cst_10 = arith.constant 0.000000e+00 : f32
      %12 = vector.broadcast %cst_10 : f32 to vector<128x128xf32>
      %c0_11 = arith.constant 0 : index
      %c0_12 = arith.constant 0 : index
      %13 = vector.load %arg8[%c0_11, %c0_12] : memref<128x128xf32, #tpu.memory_space<vmem>>, vector<128x128xf32>
      tpu.vector_store %arg8[%c0_11, %c0_12], %12 {strides = array<i32>} : memref<128x128xf32, #tpu.memory_space<vmem>>, vector<128x128xf32>,
    } else {
    }
    %c0 = arith.constant 0 : index
    %c0_1 = arith.constant 0 : index
    %3 = vector.load %arg8[%c0, %c0_1] : memref<128x128xf32, #tpu.memory_space<vmem>>, vector<128x128xf32>
    %c0_2 = arith.constant 0 : index
    %c0_3 = arith.constant 0 : index
    %4 = vector.load %arg2[%c0_2, %c0_3] : memref<128x128xbf16, #tpu.memory_space<vmem>>, vector<128x128xbf16>
    %c0_4 = arith.constant 0 : index
    %c0_5 = arith.constant 0 : index
    %5 = vector.load %arg3[%c0_4, %c0_5] : memref<128x128xbf16, #tpu.memory_space<vmem>>, vector<128x128xbf16>
    %cst = arith.constant dense<0.000000e+00> : vector<128x128xf32>
    %6 = tpu.matmul %4, %5, %cst {dimension_numbers = #tpu.dot_dimension_numbers<[1], [0], [0], [1], [0, 0, 1, 1], [], []>} : vector<128x128xbf16>, vector<128x128xbf16>, vector<128x128xf32> -> vector<128x128xf32>
    %7 = arith.addf %3, %6 : vector<128x128xf32>
    %c0_6 = arith.constant 0 : index
    %c0_7 = arith.constant 0 : index
    %8 = vector.load %arg8[%c0_6, %c0_7] : memref<128x128xf32, #tpu.memory_space<vmem>>, vector<128x128xf32>
    tpu.vector_store %arg8[%c0_6, %c0_7], %7 {strides = array<i32>} : memref<128x128xf32, #tpu.memory_space<vmem>>, vector<128x128xf32>,
    %c0_i32_8 = arith.constant 0 : i32
    %9 = arith.cmpi eq, %arg1, %c0_i32_8 : i32
    %10 = arith.extui %9 : i1 to i32
    %c0_i32_9 = arith.constant 0 : i32
    %11 = arith.cmpi ne, %10, %c0_i32_9 : i32
    scf.if %11 {
      %c0_10 = arith.constant 0 : index
      %c0_11 = arith.constant 0 : index
      %12 = vector.load %arg4[%c0_10, %c0_11] : memref<128x128xf32, #tpu.memory_space<vmem>>, vector<128x128xf32>
      %c0_12 = arith.constant 0 : index
      %c0_13 = arith.constant 0 : index
      %13 = vector.load %arg5[%c0_12, %c0_13] : memref<128x128xf32, #tpu.memory_space<vmem>>, vector<128x128xf32>
      %cst_14 = arith.constant dense<0.000000e+00> : vector<128x128xf32>
      %14 = tpu.matmul %12, %13, %cst_14 {dimension_numbers = #tpu.dot_dimension_numbers<[1], [0], [0], [1], [0, 0, 1, 1], [], []>} : vector<128x128xf32>, vector<128x128xf32>, vector<128x128xf32> -> vector<128x128xf32>
      %c0_15 = arith.constant 0 : index
      %c0_16 = arith.constant 0 : index
      %15 = vector.load %arg6[%c0_15, %c0_16] : memref<1x128xf32, #tpu.memory_space<vmem>>, vector<1x128xf32>
      %16 = vector.broadcast %15 : vector<1x128xf32> to vector<128x128xf32>
      %17 = arith.addf %14, %16 : vector<128x128xf32>
      %c0_17 = arith.constant 0 : index
      %c0_18 = arith.constant 0 : index
      %18 = vector.load %arg8[%c0_17, %c0_18] : memref<128x128xf32, #tpu.memory_space<vmem>>, vector<128x128xf32>
      %19 = arith.addf %18, %17 : vector<128x128xf32>
      %c0_19 = arith.constant 0 : index
      %c0_20 = arith.constant 0 : index
      %20 = vector.load %arg7[%c0_19, %c0_20] : memref<128x128xf32, #tpu.memory_space<vmem>>, vector<128x128xf32>
      tpu.vector_store %arg7[%c0_19, %c0_20], %19 {strides = array<i32>} : memref<128x128xf32, #tpu.memory_space<vmem>>, vector<128x128xf32>,
    } else {
    }
    return
  }
  func.func @transform_0(%arg0: i32, %arg1: i32) -> (i32, i32) {
    %c0_i32 = arith.constant 0 : i32
    return %arg0, %arg1 : i32, i32
  }
  func.func @transform_1(%arg0: i32, %arg1: i32) -> (i32, i32) {
    %c0_i32 = arith.constant 0 : i32
    %c0_i32_0 = arith.constant 0 : i32
    return %arg1, %c0_i32 : i32, i32
  }
  func.func @transform_2(%arg0: i32, %arg1: i32) -> (i32, i32) {
    %c0_i32 = arith.constant 0 : i32
    %c0_i32_0 = arith.constant 0 : i32
    return %arg0, %c0_i32 : i32, i32
  }
  func.func @transform_3(%arg0: i32, %arg1: i32) -> (i32, i32) {
    %c0_i32 = arith.constant 0 : i32
    %c0_i32_0 = arith.constant 0 : i32
    %c0_i32_1 = arith.constant 0 : i32
    return %c0_i32, %c0_i32_0 : i32, i32
  }
  func.func @transform_4(%arg0: i32, %arg1: i32) -> (i32, i32) {
    %c0_i32 = arith.constant 0 : i32
    %c0_i32_0 = arith.constant 0 : i32
    %c0_i32_1 = arith.constant 0 : i32
    return %c0_i32, %c0_i32_0 : i32, i32
  }
  func.func @transform_5(%arg0: i32, %arg1: i32) -> (i32, i32) {
    %c0_i32 = arith.constant 0 : i32
    %c0_i32_0 = arith.constant 0 : i32
    return %arg0, %c0_i32 : i32, i32
  }
}

</mosaic_0001>

<llo_original>
// kernel: sage_forward.6
$region0: #{sage_forward.6}
  #allocation0 [shape = 'u32[]', space=smem, size = 0x4, offset = 0x4, fixed_abs, tag = 'smem constant byte address 0x4 - core index']
  #allocation1 [shape = 'u32[72,128]{1,0:T(1,128)}', space=vmem, size = 0x9000, scoped, tag = 'internal scratch']
  %s0 = inlined_call_operand.vmem [shape: f32[128,128], index: 0, kind: input, shape index: {}]
  %s1 = inlined_call_operand.vmem [shape: f32[128,128], index: 1, kind: input, shape index: {}]
  %s2 = inlined_call_operand.vmem [shape: bf16[128,128], index: 2, kind: output, shape index: {}]
  %s3 = sld [smem:[#allocation0]]
  $region18: #{sage_forward.6} parent=0
    _
  %s5 = ssub.s32 1, %s3
  %s6 = scalar_select 0, %s5, %s3
  // Predicated region
  $region2: #{sage_forward.6} parent=0 // pred_check
    _
  $region3: #{sage_forward.6} parent=0 // pred_check_branch
    %8 = sbr.rel (0) target = $region5
  $region4: #{sage_forward.6} parent=0 // pred_region
    _
  $region5: #{sage_forward.6} parent=0 // pred_fallthru
    _
  // Predicated region
  $region6: #{sage_forward.6} parent=0 // pred_check
    _
  $region7: #{sage_forward.6} parent=0 // pred_check_branch
    %10 = sbr.rel (0) target = $region9
  $region8: #{sage_forward.6} parent=0 // pred_region
    _
  $region9: #{sage_forward.6} parent=0 // pred_fallthru
    _
  %v11 = vld [vmem:[%s0] sm:$0xff]
  %v12 = vld [vmem:[%s0 + $0x8] sm:$0xff]
  %v13 = vld [vmem:[%s0 + $0x10] sm:$0xff]
  %v14 = vld [vmem:[%s0 + $0x18] sm:$0xff]
  %v15 = vld [vmem:[%s0 + $0x20] sm:$0xff]
  %v16 = vld [vmem:[%s0 + $0x28] sm:$0xff]
  %v17 = vld [vmem:[%s0 + $0x30] sm:$0xff]
  %v18 = vld [vmem:[%s0 + $0x38] sm:$0xff]
  %v19 = vld [vmem:[%s0 + $0x40] sm:$0xff]
  %v20 = vld [vmem:[%s0 + $0x48] sm:$0xff]
  %v21 = vld [vmem:[%s0 + $0x50] sm:$0xff]
  %v22 = vld [vmem:[%s0 + $0x58] sm:$0xff]
  %v23 = vld [vmem:[%s0 + $0x60] sm:$0xff]
  %v24 = vld [vmem:[%s0 + $0x68] sm:$0xff]
  %v25 = vld [vmem:[%s0 + $0x70] sm:$0xff]
  %v26 = vld [vmem:[%s0 + $0x78] sm:$0xff]
  %v27 = vld [vmem:[%s1] sm:$0xff]
  %v28 = vld [vmem:[%s1 + $0x8] sm:$0xff]
  %v29 = vld [vmem:[%s1 + $0x10] sm:$0xff]
  %v30 = vld [vmem:[%s1 + $0x18] sm:$0xff]
  %v31 = vld [vmem:[%s1 + $0x20] sm:$0xff]
  %v32 = vld [vmem:[%s1 + $0x28] sm:$0xff]
  %v33 = vld [vmem:[%s1 + $0x30] sm:$0xff]
  %v34 = vld [vmem:[%s1 + $0x38] sm:$0xff]
  %v35 = vld [vmem:[%s1 + $0x40] sm:$0xff]
  %v36 = vld [vmem:[%s1 + $0x48] sm:$0xff]
  %v37 = vld [vmem:[%s1 + $0x50] sm:$0xff]
  %v38 = vld [vmem:[%s1 + $0x58] sm:$0xff]
  %v39 = vld [vmem:[%s1 + $0x60] sm:$0xff]
  %v40 = vld [vmem:[%s1 + $0x68] sm:$0xff]
  %v41 = vld [vmem:[%s1 + $0x70] sm:$0xff]
  %v42 = vld [vmem:[%s1 + $0x78] sm:$0xff]
  %43 = vmatpush.msra.mxu0 %v42
  %44 = vmatpush.msra.mxu0 %v41
  %45 = vmatpush.msra.mxu0 %v40
  %46 = vmatpush.msra.mxu0 %v39
  %47 = vmatpush.msra.mxu0 %v38
  %48 = vmatpush.msra.mxu0 %v37
  %49 = vmatpush.msra.mxu0 %v36
  %50 = vmatpush.msra.mxu0 %v35
  %51 = vmatpush.msra.mxu0 %v34
  %52 = vmatpush.msra.mxu0 %v33
  %53 = vmatpush.msra.mxu0 %v32
  %54 = vmatpush.msra.mxu0 %v31
  %55 = vmatpush.msra.mxu0 %v30
  %56 = vmatpush.msra.mxu0 %v29
  %57 = vmatpush.msra.mxu0 %v28
  %58 = vmatpush.msra.mxu0 %v27
  %59 = vmatmul.f32.gmra.mxu0 %v11
  %v60 = vpop.f32.mrf.mxu0
  %v61 = vadd.f32 0.0, %v60
  %62 = vmatmul.f32.gmra.mxu0 %v12
  %v63 = vpop.f32.mrf.mxu0
  %v64 = vadd.f32 0.0, %v63
  %65 = vmatmul.f32.gmra.mxu0 %v13
  %v66 = vpop.f32.mrf.mxu0
  %v67 = vadd.f32 0.0, %v66
  %68 = vmatmul.f32.gmra.mxu0 %v14
  %v69 = vpop.f32.mrf.mxu0
  %v70 = vadd.f32 0.0, %v69
  %71 = vmatmul.f32.gmra.mxu0 %v15
  %v72 = vpop.f32.mrf.mxu0
  %v73 = vadd.f32 0.0, %v72
  %74 = vmatmul.f32.gmra.mxu0 %v16
  %v75 = vpop.f32.mrf.mxu0
  %v76 = vadd.f32 0.0, %v75
  %77 = vmatmul.f32.gmra.mxu0 %v17
  %v78 = vpop.f32.mrf.mxu0
  %v79 = vadd.f32 0.0, %v78
  %80 = vmatmul.f32.gmra.mxu0 %v18
  %v81 = vpop.f32.mrf.mxu0
  %v82 = vadd.f32 0.0, %v81
  %83 = vmatmul.f32.gmra.mxu0 %v19
  %v84 = vpop.f32.mrf.mxu0
  %v85 = vadd.f32 0.0, %v84
  %86 = vmatmul.f32.gmra.mxu0 %v20
  %v87 = vpop.f32.mrf.mxu0
  %v88 = vadd.f32 0.0, %v87
  %89 = vmatmul.f32.gmra.mxu0 %v21
  %v90 = vpop.f32.mrf.mxu0
  %v91 = vadd.f32 0.0, %v90
  %92 = vmatmul.f32.gmra.mxu0 %v22
  %v93 = vpop.f32.mrf.mxu0
  %v94 = vadd.f32 0.0, %v93
  %95 = vmatmul.f32.gmra.mxu0 %v23
  %v96 = vpop.f32.mrf.mxu0
  %v97 = vadd.f32 0.0, %v96
  %98 = vmatmul.f32.gmra.mxu0 %v24
  %v99 = vpop.f32.mrf.mxu0
  %v100 = vadd.f32 0.0, %v99
  %101 = vmatmul.f32.gmra.mxu0 %v25
  %v102 = vpop.f32.mrf.mxu0
  %v103 = vadd.f32 0.0, %v102
  %104 = vmatmul.f32.gmra.mxu0 %v26
  %v105 = vpop.f32.mrf.mxu0
  %v106 = vadd.f32 0.0, %v105
  %107 = vdwg.mxu0
  %v108 = vpack.c.bf16 %v61, %v61
  %v109 = vpack.c.bf16 %v64, %v64
  %v110 = vpack.c.bf16 %v67, %v67
  %v111 = vpack.c.bf16 %v70, %v70
  %v112 = vpack.c.bf16 %v73, %v73
  %v113 = vpack.c.bf16 %v76, %v76
  %v114 = vpack.c.bf16 %v79, %v79
  %v115 = vpack.c.bf16 %v82, %v82
  %v116 = vpack.c.bf16 %v85, %v85
  %v117 = vpack.c.bf16 %v88, %v88
  %v118 = vpack.c.bf16 %v91, %v91
  %v119 = vpack.c.bf16 %v94, %v94
  %v120 = vpack.c.bf16 %v97, %v97
  %v121 = vpack.c.bf16 %v100, %v100
  %v122 = vpack.c.bf16 %v103, %v103
  %v123 = vpack.c.bf16 %v106, %v106
  %124 = vst [vmem:[%s2] sm:$0xf] %v108
  %125 = vst [vmem:[%s2 + $0x4] sm:$0xf] %v109
  %126 = vst [vmem:[%s2 + $0x8] sm:$0xf] %v110
  %127 = vst [vmem:[%s2 + $0xc] sm:$0xf] %v111
  %128 = vst [vmem:[%s2 + $0x10] sm:$0xf] %v112
  %129 = vst [vmem:[%s2 + $0x14] sm:$0xf] %v113
  %130 = vst [vmem:[%s2 + $0x18] sm:$0xf] %v114
  %131 = vst [vmem:[%s2 + $0x1c] sm:$0xf] %v115
  %132 = vst [vmem:[%s2 + $0x20] sm:$0xf] %v116
  %133 = vst [vmem:[%s2 + $0x24] sm:$0xf] %v117
  %134 = vst [vmem:[%s2 + $0x28] sm:$0xf] %v118
  %135 = vst [vmem:[%s2 + $0x2c] sm:$0xf] %v119
  %136 = vst [vmem:[%s2 + $0x30] sm:$0xf] %v120
  %137 = vst [vmem:[%s2 + $0x34] sm:$0xf] %v121
  %138 = vst [vmem:[%s2 + $0x38] sm:$0xf] %v122
  %139 = vst [vmem:[%s2 + $0x3c] sm:$0xf] %v123
  // Predicated region
  $region10: #{sage_forward.6} parent=0 // pred_check
    _
  $region11: #{sage_forward.6} parent=0 // pred_check_branch
    %141 = sbr.rel (0) target = $region13
  $region12: #{sage_forward.6} parent=0 // pred_region
    _
  $region13: #{sage_forward.6} parent=0 // pred_fallthru
    _
  // Predicated region
  $region14: #{sage_forward.6} parent=0 // pred_check
    _
  $region15: #{sage_forward.6} parent=0 // pred_check_branch
    %143 = sbr.rel (0) target = $region17
  $region16: #{sage_forward.6} parent=0 // pred_region
    _
  $region17: #{sage_forward.6} parent=0 // pred_fallthru
    _

// kernel: sage_forward.7
$region0: #{sage_forward.7}
  #allocation0 [shape = 'u32[]', space=smem, size = 0x4, offset = 0x4, fixed_abs, tag = 'smem constant byte address 0x4 - core index']
  #allocation1 [shape = 'u32[72,128]{1,0:T(1,128)}', space=vmem, size = 0x9000, scoped, tag = 'internal scratch']
  #allocation2 [shape = 'f32[128,128]{1,0:T(8,128)}', space=vmem, size = 0x10000, scoped, tag = 'scratch operand']
  %s0 = inlined_call_operand.vmem [shape: bf16[128,128], index: 0, kind: input, shape index: {}]
  %s1 = inlined_call_operand.vmem [shape: bf16[128,128], index: 1, kind: input, shape index: {}]
  %s2 = inlined_call_operand.vmem [shape: f32[128,128], index: 2, kind: input, shape index: {}]
  %s3 = inlined_call_operand.vmem [shape: f32[128,128], index: 3, kind: input, shape index: {}]
  %s4 = inlined_call_operand.vmem [shape: f32[1,128], index: 4, kind: input, shape index: {}]
  %s5 = inlined_call_operand.vmem [shape: f32[128,128], index: 5, kind: output, shape index: {}]
  %s6 = sld [smem:[#allocation0]]
  $region38: #{sage_forward.7} parent=0
    _
  %s8 = ssub.s32 1, %s6
  %s9 = scalar_select 0, %s8, %s6
  // Predicated region
  $region2: #{sage_forward.7} parent=0 // pred_check
    _
  $region3: #{sage_forward.7} parent=0 // pred_check_branch
    %11 = sbr.rel (0) target = $region5
  $region4: #{sage_forward.7} parent=0 // pred_region
    _
  $region5: #{sage_forward.7} parent=0 // pred_fallthru
    _
  // Predicated region
  $region6: #{sage_forward.7} parent=0 // pred_check
    _
  $region7: #{sage_forward.7} parent=0 // pred_check_branch
    %13 = sbr.rel (0) target = $region9
  $region8: #{sage_forward.7} parent=0 // pred_region
    _
  $region9: #{sage_forward.7} parent=0 // pred_fallthru
    _
  // Predicated region
  $region10: #{sage_forward.7} parent=0 // pred_check
    _
  $region11: #{sage_forward.7} parent=0 // pred_check_branch
    %15 = sbr.rel (0) target = $region13
  $region12: #{sage_forward.7} parent=0 // pred_region
    _
  $region13: #{sage_forward.7} parent=0 // pred_fallthru
    _
  // Predicated region
  $region14: #{sage_forward.7} parent=0 // pred_check
    _
  $region15: #{sage_forward.7} parent=0 // pred_check_branch
    %17 = sbr.rel (0) target = $region17
  $region16: #{sage_forward.7} parent=0 // pred_region
    _
  $region17: #{sage_forward.7} parent=0 // pred_fallthru
    _
  // Predicated region
  $region18: #{sage_forward.7} parent=0 // pred_check
    _
  $region19: #{sage_forward.7} parent=0 // pred_check_branch
    %19 = sbr.rel (0) target = $region21
  $region20: #{sage_forward.7} parent=0 // pred_region
    _
  $region21: #{sage_forward.7} parent=0 // pred_fallthru
    _
  %p20 = scmp.eq.s32.totalorder 0, 0
  // Predicated region
  $region22: #{sage_forward.7} parent=0 // pred_check
    %p21 = pneg %p20
  $region23: #{sage_forward.7} parent=0 // pred_check_branch
    %23 = sbr.rel (%p21) target = $region25
  $region24: #{sage_forward.7} parent=0 // pred_region
    %24 = vst [vmem:[#allocation2] sm:$0xff] 0.0
    %25 = vst [vmem:[#allocation2 + $0x8] sm:$0xff] 0.0
    %26 = vst [vmem:[#allocation2 + $0x10] sm:$0xff] 0.0
    %27 = vst [vmem:[#allocation2 + $0x18] sm:$0xff] 0.0
    %28 = vst [vmem:[#allocation2 + $0x20] sm:$0xff] 0.0
    %29 = vst [vmem:[#allocation2 + $0x28] sm:$0xff] 0.0
    %30 = vst [vmem:[#allocation2 + $0x30] sm:$0xff] 0.0
    %31 = vst [vmem:[#allocation2 + $0x38] sm:$0xff] 0.0
    %32 = vst [vmem:[#allocation2 + $0x40] sm:$0xff] 0.0
    %33 = vst [vmem:[#allocation2 + $0x48] sm:$0xff] 0.0
    %34 = vst [vmem:[#allocation2 + $0x50] sm:$0xff] 0.0
    %35 = vst [vmem:[#allocation2 + $0x58] sm:$0xff] 0.0
    %36 = vst [vmem:[#allocation2 + $0x60] sm:$0xff] 0.0
    %37 = vst [vmem:[#allocation2 + $0x68] sm:$0xff] 0.0
    %38 = vst [vmem:[#allocation2 + $0x70] sm:$0xff] 0.0
    %39 = vst [vmem:[#allocation2 + $0x78] sm:$0xff] 0.0
  $region25: #{sage_forward.7} parent=0 // pred_fallthru
    _
  %v40 = vld [vmem:[#allocation2] sm:$0xff]
  %v41 = vld [vmem:[#allocation2 + $0x8] sm:$0xff]
  %v42 = vld [vmem:[#allocation2 + $0x10] sm:$0xff]
  %v43 = vld [vmem:[#allocation2 + $0x18] sm:$0xff]
  %v44 = vld [vmem:[#allocation2 + $0x20] sm:$0xff]
  %v45 = vld [vmem:[#allocation2 + $0x28] sm:$0xff]
  %v46 = vld [vmem:[#allocation2 + $0x30] sm:$0xff]
  %v47 = vld [vmem:[#allocation2 + $0x38] sm:$0xff]
  %v48 = vld [vmem:[#allocation2 + $0x40] sm:$0xff]
  %v49 = vld [vmem:[#allocation2 + $0x48] sm:$0xff]
  %v50 = vld [vmem:[#allocation2 + $0x50] sm:$0xff]
  %v51 = vld [vmem:[#allocation2 + $0x58] sm:$0xff]
  %v52 = vld [vmem:[#allocation2 + $0x60] sm:$0xff]
  %v53 = vld [vmem:[#allocation2 + $0x68] sm:$0xff]
  %v54 = vld [vmem:[#allocation2 + $0x70] sm:$0xff]
  %v55 = vld [vmem:[#allocation2 + $0x78] sm:$0xff]
  %v56 = vld [vmem:[%s0] sm:$0xf]
  %v57 = vld [vmem:[%s0 + $0x4] sm:$0xf]
  %v58 = vld [vmem:[%s0 + $0x8] sm:$0xf]
  %v59 = vld [vmem:[%s0 + $0xc] sm:$0xf]
  %v60 = vld [vmem:[%s0 + $0x10] sm:$0xf]
  %v61 = vld [vmem:[%s0 + $0x14] sm:$0xf]
  %v62 = vld [vmem:[%s0 + $0x18] sm:$0xf]
  %v63 = vld [vmem:[%s0 + $0x1c] sm:$0xf]
  %v64 = vld [vmem:[%s0 + $0x20] sm:$0xf]
  %v65 = vld [vmem:[%s0 + $0x24] sm:$0xf]
  %v66 = vld [vmem:[%s0 + $0x28] sm:$0xf]
  %v67 = vld [vmem:[%s0 + $0x2c] sm:$0xf]
  %v68 = vld [vmem:[%s0 + $0x30] sm:$0xf]
  %v69 = vld [vmem:[%s0 + $0x34] sm:$0xf]
  %v70 = vld [vmem:[%s0 + $0x38] sm:$0xf]
  %v71 = vld [vmem:[%s0 + $0x3c] sm:$0xf]
  %v72 = vld [vmem:[%s1] sm:$0xf]
  %v73 = vld [vmem:[%s1 + $0x4] sm:$0xf]
  %v74 = vld [vmem:[%s1 + $0x8] sm:$0xf]
  %v75 = vld [vmem:[%s1 + $0xc] sm:$0xf]
  %v76 = vld [vmem:[%s1 + $0x10] sm:$0xf]
  %v77 = vld [vmem:[%s1 + $0x14] sm:$0xf]
  %v78 = vld [vmem:[%s1 + $0x18] sm:$0xf]
  %v79 = vld [vmem:[%s1 + $0x1c] sm:$0xf]
  %v80 = vld [vmem:[%s1 + $0x20] sm:$0xf]
  %v81 = vld [vmem:[%s1 + $0x24] sm:$0xf]
  %v82 = vld [vmem:[%s1 + $0x28] sm:$0xf]
  %v83 = vld [vmem:[%s1 + $0x2c] sm:$0xf]
  %v84 = vld [vmem:[%s1 + $0x30] sm:$0xf]
  %v85 = vld [vmem:[%s1 + $0x34] sm:$0xf]
  %v86 = vld [vmem:[%s1 + $0x38] sm:$0xf]
  %v87 = vld [vmem:[%s1 + $0x3c] sm:$0xf]
  %v104 = vunpack.c.l.b16 %v56
  %v105 = vunpack.c.l.b16 %v57
  %v106 = vunpack.c.l.b16 %v58
  %v107 = vunpack.c.l.b16 %v59
  %v108 = vunpack.c.l.b16 %v60
  %v109 = vunpack.c.l.b16 %v61
  %v110 = vunpack.c.l.b16 %v62
  %v111 = vunpack.c.l.b16 %v63
  %v112 = vunpack.c.l.b16 %v64
  %v113 = vunpack.c.l.b16 %v65
  %v114 = vunpack.c.l.b16 %v66
  %v115 = vunpack.c.l.b16 %v67
  %v116 = vunpack.c.l.b16 %v68
  %v117 = vunpack.c.l.b16 %v69
  %v118 = vunpack.c.l.b16 %v70
  %v119 = vunpack.c.l.b16 %v71
  %v120 = vpack.c.b16 %v105, %v104
  %v121 = vpack.c.b16 %v107, %v106
  %v122 = vpack.c.b16 %v109, %v108
  %v123 = vpack.c.b16 %v111, %v110
  %v124 = vpack.c.b16 %v113, %v112
  %v125 = vpack.c.b16 %v115, %v114
  %v126 = vpack.c.b16 %v117, %v116
  %v127 = vpack.c.b16 %v119, %v118
  %v152 = vunpack.c.l.b16 %v72
  %v153 = vunpack.c.l.b16 %v73
  %v154 = vunpack.c.l.b16 %v74
  %v155 = vunpack.c.l.b16 %v75
  %v156 = vunpack.c.l.b16 %v76
  %v157 = vunpack.c.l.b16 %v77
  %v158 = vunpack.c.l.b16 %v78
  %v159 = vunpack.c.l.b16 %v79
  %v160 = vunpack.c.l.b16 %v80
  %v161 = vunpack.c.l.b16 %v81
  %v162 = vunpack.c.l.b16 %v82
  %v163 = vunpack.c.l.b16 %v83
  %v164 = vunpack.c.l.b16 %v84
  %v165 = vunpack.c.l.b16 %v85
  %v166 = vunpack.c.l.b16 %v86
  %v167 = vunpack.c.l.b16 %v87
  %v168 = vpack.c.b16 %v153, %v152
  %v169 = vpack.c.b16 %v155, %v154
  %v170 = vpack.c.b16 %v157, %v156
  %v171 = vpack.c.b16 %v159, %v158
  %v172 = vpack.c.b16 %v161, %v160
  %v173 = vpack.c.b16 %v163, %v162
  %v174 = vpack.c.b16 %v165, %v164
  %v175 = vpack.c.b16 %v167, %v166
  %184 = vmatpush.bf16.msra.mxu0 %v175
  %185 = vmatpush.bf16.msra.mxu0 %v174
  %186 = vmatpush.bf16.msra.mxu0 %v173
  %187 = vmatpush.bf16.msra.mxu0 %v172
  %188 = vmatpush.bf16.msra.mxu0 %v171
  %189 = vmatpush.bf16.msra.mxu0 %v170
  %190 = vmatpush.bf16.msra.mxu0 %v169
  %191 = vmatpush.bf16.msra.mxu0 %v168
  %192 = vmatmul.bf16.gmra.mxu0 %v120
  %v193 = vpop.f32.mrf.mxu0
  %v194 = vadd.f32 0.0, %v193
  %v195 = vpop.f32.mrf.mxu0
  %v196 = vadd.f32 0.0, %v195
  %197 = vmatmul.bf16.gmra.mxu0 %v121
  %v198 = vpop.f32.mrf.mxu0
  %v199 = vadd.f32 0.0, %v198
  %v200 = vpop.f32.mrf.mxu0
  %v201 = vadd.f32 0.0, %v200
  %202 = vmatmul.bf16.gmra.mxu0 %v122
  %v203 = vpop.f32.mrf.mxu0
  %v204 = vadd.f32 0.0, %v203
  %v205 = vpop.f32.mrf.mxu0
  %v206 = vadd.f32 0.0, %v205
  %207 = vmatmul.bf16.gmra.mxu0 %v123
  %v208 = vpop.f32.mrf.mxu0
  %v209 = vadd.f32 0.0, %v208
  %v210 = vpop.f32.mrf.mxu0
  %v211 = vadd.f32 0.0, %v210
  %212 = vmatmul.bf16.gmra.mxu0 %v124
  %v213 = vpop.f32.mrf.mxu0
  %v214 = vadd.f32 0.0, %v213
  %v215 = vpop.f32.mrf.mxu0
  %v216 = vadd.f32 0.0, %v215
  %217 = vmatmul.bf16.gmra.mxu0 %v125
  %v218 = vpop.f32.mrf.mxu0
  %v219 = vadd.f32 0.0, %v218
  %v220 = vpop.f32.mrf.mxu0
  %v221 = vadd.f32 0.0, %v220
  %222 = vmatmul.bf16.gmra.mxu0 %v126
  %v223 = vpop.f32.mrf.mxu0
  %v224 = vadd.f32 0.0, %v223
  %v225 = vpop.f32.mrf.mxu0
  %v226 = vadd.f32 0.0, %v225
  %227 = vmatmul.bf16.gmra.mxu0 %v127
  %v228 = vpop.f32.mrf.mxu0
  %v229 = vadd.f32 0.0, %v228
  %v230 = vpop.f32.mrf.mxu0
  %v231 = vadd.f32 0.0, %v230
  %232 = vdwg.mxu0
  %v233 = vadd.f32 %v40, %v194
  %v234 = vadd.f32 %v41, %v196
  %v235 = vadd.f32 %v42, %v199
  %v236 = vadd.f32 %v43, %v201
  %v237 = vadd.f32 %v44, %v204
  %v238 = vadd.f32 %v45, %v206
  %v239 = vadd.f32 %v46, %v209
  %v240 = vadd.f32 %v47, %v211
  %v241 = vadd.f32 %v48, %v214
  %v242 = vadd.f32 %v49, %v216
  %v243 = vadd.f32 %v50, %v219
  %v244 = vadd.f32 %v51, %v221
  %v245 = vadd.f32 %v52, %v224
  %v246 = vadd.f32 %v53, %v226
  %v247 = vadd.f32 %v54, %v229
  %v248 = vadd.f32 %v55, %v231
  %249 = vst [vmem:[#allocation2] sm:$0xff] %v233
  %250 = vst [vmem:[#allocation2 + $0x8] sm:$0xff] %v234
  %251 = vst [vmem:[#allocation2 + $0x10] sm:$0xff] %v235
  %252 = vst [vmem:[#allocation2 + $0x18] sm:$0xff] %v236
  %253 = vst [vmem:[#allocation2 + $0x20] sm:$0xff] %v237
  %254 = vst [vmem:[#allocation2 + $0x28] sm:$0xff] %v238
  %255 = vst [vmem:[#allocation2 + $0x30] sm:$0xff] %v239
  %256 = vst [vmem:[#allocation2 + $0x38] sm:$0xff] %v240
  %257 = vst [vmem:[#allocation2 + $0x40] sm:$0xff] %v241
  %258 = vst [vmem:[#allocation2 + $0x48] sm:$0xff] %v242
  %259 = vst [vmem:[#allocation2 + $0x50] sm:$0xff] %v243
  %260 = vst [vmem:[#allocation2 + $0x58] sm:$0xff] %v244
  %261 = vst [vmem:[#allocation2 + $0x60] sm:$0xff] %v245
  %262 = vst [vmem:[#allocation2 + $0x68] sm:$0xff] %v246
  %263 = vst [vmem:[#allocation2 + $0x70] sm:$0xff] %v247
  %264 = vst [vmem:[#allocation2 + $0x78] sm:$0xff] %v248
  // Predicated region
  $region26: #{sage_forward.7} parent=0 // pred_check
    %p265 = pneg %p20
  $region27: #{sage_forward.7} parent=0 // pred_check_branch
    %267 = sbr.rel (%p265) target = $region29
  $region28: #{sage_forward.7} parent=0 // pred_region
    %v268 = vld [vmem:[%s2] sm:$0xff]
    %v269 = vld [vmem:[%s2 + $0x8] sm:$0xff]
    %v270 = vld [vmem:[%s2 + $0x10] sm:$0xff]
    %v271 = vld [vmem:[%s2 + $0x18] sm:$0xff]
    %v272 = vld [vmem:[%s2 + $0x20] sm:$0xff]
    %v273 = vld [vmem:[%s2 + $0x28] sm:$0xff]
    %v274 = vld [vmem:[%s2 + $0x30] sm:$0xff]
    %v275 = vld [vmem:[%s2 + $0x38] sm:$0xff]
    %v276 = vld [vmem:[%s2 + $0x40] sm:$0xff]
    %v277 = vld [vmem:[%s2 + $0x48] sm:$0xff]
    %v278 = vld [vmem:[%s2 + $0x50] sm:$0xff]
    %v279 = vld [vmem:[%s2 + $0x58] sm:$0xff]
    %v280 = vld [vmem:[%s2 + $0x60] sm:$0xff]
    %v281 = vld [vmem:[%s2 + $0x68] sm:$0xff]
    %v282 = vld [vmem:[%s2 + $0x70] sm:$0xff]
    %v283 = vld [vmem:[%s2 + $0x78] sm:$0xff]
    %v284 = vld [vmem:[%s3] sm:$0xff]
    %v285 = vld [vmem:[%s3 + $0x8] sm:$0xff]
    %v286 = vld [vmem:[%s3 + $0x10] sm:$0xff]
    %v287 = vld [vmem:[%s3 + $0x18] sm:$0xff]
    %v288 = vld [vmem:[%s3 + $0x20] sm:$0xff]
    %v289 = vld [vmem:[%s3 + $0x28] sm:$0xff]
    %v290 = vld [vmem:[%s3 + $0x30] sm:$0xff]
    %v291 = vld [vmem:[%s3 + $0x38] sm:$0xff]
    %v292 = vld [vmem:[%s3 + $0x40] sm:$0xff]
    %v293 = vld [vmem:[%s3 + $0x48] sm:$0xff]
    %v294 = vld [vmem:[%s3 + $0x50] sm:$0xff]
    %v295 = vld [vmem:[%s3 + $0x58] sm:$0xff]
    %v296 = vld [vmem:[%s3 + $0x60] sm:$0xff]
    %v297 = vld [vmem:[%s3 + $0x68] sm:$0xff]
    %v298 = vld [vmem:[%s3 + $0x70] sm:$0xff]
    %v299 = vld [vmem:[%s3 + $0x78] sm:$0xff]
    %v300 = vld [vmem:[%s4] sm:$0x1]
    %v302 = vperm.slane %v300, 0
    %304 = vmatpush.msra.mxu0 %v299
    %305 = vmatpush.msra.mxu0 %v298
    %306 = vmatpush.msra.mxu0 %v297
    %307 = vmatpush.msra.mxu0 %v296
    %308 = vmatpush.msra.mxu0 %v295
    %309 = vmatpush.msra.mxu0 %v294
    %310 = vmatpush.msra.mxu0 %v293
    %311 = vmatpush.msra.mxu0 %v292
    %312 = vmatpush.msra.mxu0 %v291
    %313 = vmatpush.msra.mxu0 %v290
    %314 = vmatpush.msra.mxu0 %v289
    %315 = vmatpush.msra.mxu0 %v288
    %316 = vmatpush.msra.mxu0 %v287
    %317 = vmatpush.msra.mxu0 %v286
    %318 = vmatpush.msra.mxu0 %v285
    %319 = vmatpush.msra.mxu0 %v284
    %320 = vmatmul.f32.gmra.mxu0 %v268
    %v321 = vpop.f32.mrf.mxu0
    %v322 = vadd.f32 %v302, %v321
    %323 = vmatmul.f32.gmra.mxu0 %v269
    %v324 = vpop.f32.mrf.mxu0
    %v325 = vadd.f32 %v302, %v324
    %326 = vmatmul.f32.gmra.mxu0 %v270
    %v327 = vpop.f32.mrf.mxu0
    %v328 = vadd.f32 %v302, %v327
    %329 = vmatmul.f32.gmra.mxu0 %v271
    %v330 = vpop.f32.mrf.mxu0
    %v331 = vadd.f32 %v302, %v330
    %332 = vmatmul.f32.gmra.mxu0 %v272
    %v333 = vpop.f32.mrf.mxu0
    %v334 = vadd.f32 %v302, %v333
    %335 = vmatmul.f32.gmra.mxu0 %v273
    %v336 = vpop.f32.mrf.mxu0
    %v337 = vadd.f32 %v302, %v336
    %338 = vmatmul.f32.gmra.mxu0 %v274
    %v339 = vpop.f32.mrf.mxu0
    %v340 = vadd.f32 %v302, %v339
    %341 = vmatmul.f32.gmra.mxu0 %v275
    %v342 = vpop.f32.mrf.mxu0
    %v343 = vadd.f32 %v302, %v342
    %344 = vmatmul.f32.gmra.mxu0 %v276
    %v345 = vpop.f32.mrf.mxu0
    %v346 = vadd.f32 %v302, %v345
    %347 = vmatmul.f32.gmra.mxu0 %v277
    %v348 = vpop.f32.mrf.mxu0
    %v349 = vadd.f32 %v302, %v348
    %350 = vmatmul.f32.gmra.mxu0 %v278
    %v351 = vpop.f32.mrf.mxu0
    %v352 = vadd.f32 %v302, %v351
    %353 = vmatmul.f32.gmra.mxu0 %v279
    %v354 = vpop.f32.mrf.mxu0
    %v355 = vadd.f32 %v302, %v354
    %356 = vmatmul.f32.gmra.mxu0 %v280
    %v357 = vpop.f32.mrf.mxu0
    %v358 = vadd.f32 %v302, %v357
    %359 = vmatmul.f32.gmra.mxu0 %v281
    %v360 = vpop.f32.mrf.mxu0
    %v361 = vadd.f32 %v302, %v360
    %362 = vmatmul.f32.gmra.mxu0 %v282
    %v363 = vpop.f32.mrf.mxu0
    %v364 = vadd.f32 %v302, %v363
    %365 = vmatmul.f32.gmra.mxu0 %v283
    %v366 = vpop.f32.mrf.mxu0
    %v367 = vadd.f32 %v302, %v366
    %368 = vdwg.mxu0
    %v369 = vld [vmem:[#allocation2] sm:$0xff]
    %v370 = vld [vmem:[#allocation2 + $0x8] sm:$0xff]
    %v371 = vld [vmem:[#allocation2 + $0x10] sm:$0xff]
    %v372 = vld [vmem:[#allocation2 + $0x18] sm:$0xff]
    %v373 = vld [vmem:[#allocation2 + $0x20] sm:$0xff]
    %v374 = vld [vmem:[#allocation2 + $0x28] sm:$0xff]
    %v375 = vld [vmem:[#allocation2 + $0x30] sm:$0xff]
    %v376 = vld [vmem:[#allocation2 + $0x38] sm:$0xff]
    %v377 = vld [vmem:[#allocation2 + $0x40] sm:$0xff]
    %v378 = vld [vmem:[#allocation2 + $0x48] sm:$0xff]
    %v379 = vld [vmem:[#allocation2 + $0x50] sm:$0xff]
    %v380 = vld [vmem:[#allocation2 + $0x58] sm:$0xff]
    %v381 = vld [vmem:[#allocation2 + $0x60] sm:$0xff]
    %v382 = vld [vmem:[#allocation2 + $0x68] sm:$0xff]
    %v383 = vld [vmem:[#allocation2 + $0x70] sm:$0xff]
    %v384 = vld [vmem:[#allocation2 + $0x78] sm:$0xff]
    %v385 = vadd.f32 %v369, %v322
    %v386 = vadd.f32 %v370, %v325
    %v387 = vadd.f32 %v371, %v328
    %v388 = vadd.f32 %v372, %v331
    %v389 = vadd.f32 %v373, %v334
    %v390 = vadd.f32 %v374, %v337
    %v391 = vadd.f32 %v375, %v340
    %v392 = vadd.f32 %v376, %v343
    %v393 = vadd.f32 %v377, %v346
    %v394 = vadd.f32 %v378, %v349
    %v395 = vadd.f32 %v379, %v352
    %v396 = vadd.f32 %v380, %v355
    %v397 = vadd.f32 %v381, %v358
    %v398 = vadd.f32 %v382, %v361
    %v399 = vadd.f32 %v383, %v364
    %v400 = vadd.f32 %v384, %v367
    %v401 = vmax.f32 %v385, 0.0
    %v402 = vmax.f32 %v386, 0.0
    %v403 = vmax.f32 %v387, 0.0
    %v404 = vmax.f32 %v388, 0.0
    %v405 = vmax.f32 %v389, 0.0
    %v406 = vmax.f32 %v390, 0.0
    %v407 = vmax.f32 %v391, 0.0
    %v408 = vmax.f32 %v392, 0.0
    %v409 = vmax.f32 %v393, 0.0
    %v410 = vmax.f32 %v394, 0.0
    %v411 = vmax.f32 %v395, 0.0
    %v412 = vmax.f32 %v396, 0.0
    %v413 = vmax.f32 %v397, 0.0
    %v414 = vmax.f32 %v398, 0.0
    %v415 = vmax.f32 %v399, 0.0
    %v416 = vmax.f32 %v400, 0.0
    %417 = vst [vmem:[%s5] sm:$0xff] %v401
    %418 = vst [vmem:[%s5 + $0x8] sm:$0xff] %v402
    %419 = vst [vmem:[%s5 + $0x10] sm:$0xff] %v403
    %420 = vst [vmem:[%s5 + $0x18] sm:$0xff] %v404
    %421 = vst [vmem:[%s5 + $0x20] sm:$0xff] %v405
    %422 = vst [vmem:[%s5 + $0x28] sm:$0xff] %v406
    %423 = vst [vmem:[%s5 + $0x30] sm:$0xff] %v407
    %424 = vst [vmem:[%s5 + $0x38] sm:$0xff] %v408
    %425 = vst [vmem:[%s5 + $0x40] sm:$0xff] %v409
    %426 = vst [vmem:[%s5 + $0x48] sm:$0xff] %v410
    %427 = vst [vmem:[%s5 + $0x50] sm:$0xff] %v411
    %428 = vst [vmem:[%s5 + $0x58] sm:$0xff] %v412
    %429 = vst [vmem:[%s5 + $0x60] sm:$0xff] %v413
    %430 = vst [vmem:[%s5 + $0x68] sm:$0xff] %v414
    %431 = vst [vmem:[%s5 + $0x70] sm:$0xff] %v415
    %432 = vst [vmem:[%s5 + $0x78] sm:$0xff] %v416
  $region29: #{sage_forward.7} parent=0 // pred_fallthru
    _
  // Predicated region
  $region30: #{sage_forward.7} parent=0 // pred_check
    _
  $region31: #{sage_forward.7} parent=0 // pred_check_branch
    %434 = sbr.rel (0) target = $region33
  $region32: #{sage_forward.7} parent=0 // pred_region
    _
  $region33: #{sage_forward.7} parent=0 // pred_fallthru
    _
  // Predicated region
  $region34: #{sage_forward.7} parent=0 // pred_check
    _
  $region35: #{sage_forward.7} parent=0 // pred_check_branch
    %436 = sbr.rel (0) target = $region37
  $region36: #{sage_forward.7} parent=0 // pred_region
    _
  $region37: #{sage_forward.7} parent=0 // pred_fallthru
    _

// kernel: sage_forward.11
$region0: #{sage_forward.11}
  #allocation0 [shape = 'u32[]', space=smem, size = 0x4, offset = 0x4, fixed_abs, tag = 'smem constant byte address 0x4 - core index']
  #allocation1 [shape = 'u32[72,128]{1,0:T(1,128)}', space=vmem, size = 0x9000, scoped, tag = 'internal scratch']
  #allocation2 [shape = 'f32[128,128]{1,0:T(8,128)}', space=vmem, size = 0x10000, scoped, tag = 'scratch operand']
  %s0 = inlined_call_operand.vmem [shape: bf16[128,128], index: 0, kind: input, shape index: {}]
  %s1 = inlined_call_operand.vmem [shape: bf16[128,128], index: 1, kind: input, shape index: {}]
  %s2 = inlined_call_operand.vmem [shape: f32[128,128], index: 2, kind: input, shape index: {}]
  %s3 = inlined_call_operand.vmem [shape: f32[128,128], index: 3, kind: input, shape index: {}]
  %s4 = inlined_call_operand.vmem [shape: f32[1,128], index: 4, kind: input, shape index: {}]
  %s5 = inlined_call_operand.vmem [shape: f32[128,128], index: 5, kind: output, shape index: {}]
  %s6 = sld [smem:[#allocation0]]
  $region38: #{sage_forward.11} parent=0
    _
  %s8 = ssub.s32 1, %s6
  %s9 = scalar_select 0, %s8, %s6
  // Predicated region
  $region2: #{sage_forward.11} parent=0 // pred_check
    _
  $region3: #{sage_forward.11} parent=0 // pred_check_branch
    %11 = sbr.rel (0) target = $region5
  $region4: #{sage_forward.11} parent=0 // pred_region
    _
  $region5: #{sage_forward.11} parent=0 // pred_fallthru
    _
  // Predicated region
  $region6: #{sage_forward.11} parent=0 // pred_check
    _
  $region7: #{sage_forward.11} parent=0 // pred_check_branch
    %13 = sbr.rel (0) target = $region9
  $region8: #{sage_forward.11} parent=0 // pred_region
    _
  $region9: #{sage_forward.11} parent=0 // pred_fallthru
    _
  // Predicated region
  $region10: #{sage_forward.11} parent=0 // pred_check
    _
  $region11: #{sage_forward.11} parent=0 // pred_check_branch
    %15 = sbr.rel (0) target = $region13
  $region12: #{sage_forward.11} parent=0 // pred_region
    _
  $region13: #{sage_forward.11} parent=0 // pred_fallthru
    _
  // Predicated region
  $region14: #{sage_forward.11} parent=0 // pred_check
    _
  $region15: #{sage_forward.11} parent=0 // pred_check_branch
    %17 = sbr.rel (0) target = $region17
  $region16: #{sage_forward.11} parent=0 // pred_region
    _
  $region17: #{sage_forward.11} parent=0 // pred_fallthru
    _
  // Predicated region
  $region18: #{sage_forward.11} parent=0 // pred_check
    _
  $region19: #{sage_forward.11} parent=0 // pred_check_branch
    %19 = sbr.rel (0) target = $region21
  $region20: #{sage_forward.11} parent=0 // pred_region
    _
  $region21: #{sage_forward.11} parent=0 // pred_fallthru
    _
  %p20 = scmp.eq.s32.totalorder 0, 0
  // Predicated region
  $region22: #{sage_forward.11} parent=0 // pred_check
    %p21 = pneg %p20
  $region23: #{sage_forward.11} parent=0 // pred_check_branch
    %23 = sbr.rel (%p21) target = $region25
  $region24: #{sage_forward.11} parent=0 // pred_region
    %24 = vst [vmem:[#allocation2] sm:$0xff] 0.0
    %25 = vst [vmem:[#allocation2 + $0x8] sm:$0xff] 0.0
    %26 = vst [vmem:[#allocation2 + $0x10] sm:$0xff] 0.0
    %27 = vst [vmem:[#allocation2 + $0x18] sm:$0xff] 0.0
    %28 = vst [vmem:[#allocation2 + $0x20] sm:$0xff] 0.0
    %29 = vst [vmem:[#allocation2 + $0x28] sm:$0xff] 0.0
    %30 = vst [vmem:[#allocation2 + $0x30] sm:$0xff] 0.0
    %31 = vst [vmem:[#allocation2 + $0x38] sm:$0xff] 0.0
    %32 = vst [vmem:[#allocation2 + $0x40] sm:$0xff] 0.0
    %33 = vst [vmem:[#allocation2 + $0x48] sm:$0xff] 0.0
    %34 = vst [vmem:[#allocation2 + $0x50] sm:$0xff] 0.0
    %35 = vst [vmem:[#allocation2 + $0x58] sm:$0xff] 0.0
    %36 = vst [vmem:[#allocation2 + $0x60] sm:$0xff] 0.0
    %37 = vst [vmem:[#allocation2 + $0x68] sm:$0xff] 0.0
    %38 = vst [vmem:[#allocation2 + $0x70] sm:$0xff] 0.0
    %39 = vst [vmem:[#allocation2 + $0x78] sm:$0xff] 0.0
  $region25: #{sage_forward.11} parent=0 // pred_fallthru
    _
  %v40 = vld [vmem:[#allocation2] sm:$0xff]
  %v41 = vld [vmem:[#allocation2 + $0x8] sm:$0xff]
  %v42 = vld [vmem:[#allocation2 + $0x10] sm:$0xff]
  %v43 = vld [vmem:[#allocation2 + $0x18] sm:$0xff]
  %v44 = vld [vmem:[#allocation2 + $0x20] sm:$0xff]
  %v45 = vld [vmem:[#allocation2 + $0x28] sm:$0xff]
  %v46 = vld [vmem:[#allocation2 + $0x30] sm:$0xff]
  %v47 = vld [vmem:[#allocation2 + $0x38] sm:$0xff]
  %v48 = vld [vmem:[#allocation2 + $0x40] sm:$0xff]
  %v49 = vld [vmem:[#allocation2 + $0x48] sm:$0xff]
  %v50 = vld [vmem:[#allocation2 + $0x50] sm:$0xff]
  %v51 = vld [vmem:[#allocation2 + $0x58] sm:$0xff]
  %v52 = vld [vmem:[#allocation2 + $0x60] sm:$0xff]
  %v53 = vld [vmem:[#allocation2 + $0x68] sm:$0xff]
  %v54 = vld [vmem:[#allocation2 + $0x70] sm:$0xff]
  %v55 = vld [vmem:[#allocation2 + $0x78] sm:$0xff]
  %v56 = vld [vmem:[%s0] sm:$0xf]
  %v57 = vld [vmem:[%s0 + $0x4] sm:$0xf]
  %v58 = vld [vmem:[%s0 + $0x8] sm:$0xf]
  %v59 = vld [vmem:[%s0 + $0xc] sm:$0xf]
  %v60 = vld [vmem:[%s0 + $0x10] sm:$0xf]
  %v61 = vld [vmem:[%s0 + $0x14] sm:$0xf]
  %v62 = vld [vmem:[%s0 + $0x18] sm:$0xf]
  %v63 = vld [vmem:[%s0 + $0x1c] sm:$0xf]
  %v64 = vld [vmem:[%s0 + $0x20] sm:$0xf]
  %v65 = vld [vmem:[%s0 + $0x24] sm:$0xf]
  %v66 = vld [vmem:[%s0 + $0x28] sm:$0xf]
  %v67 = vld [vmem:[%s0 + $0x2c] sm:$0xf]
  %v68 = vld [vmem:[%s0 + $0x30] sm:$0xf]
  %v69 = vld [vmem:[%s0 + $0x34] sm:$0xf]
  %v70 = vld [vmem:[%s0 + $0x38] sm:$0xf]
  %v71 = vld [vmem:[%s0 + $0x3c] sm:$0xf]
  %v72 = vld [vmem:[%s1] sm:$0xf]
  %v73 = vld [vmem:[%s1 + $0x4] sm:$0xf]
  %v74 = vld [vmem:[%s1 + $0x8] sm:$0xf]
  %v75 = vld [vmem:[%s1 + $0xc] sm:$0xf]
  %v76 = vld [vmem:[%s1 + $0x10] sm:$0xf]
  %v77 = vld [vmem:[%s1 + $0x14] sm:$0xf]
  %v78 = vld [vmem:[%s1 + $0x18] sm:$0xf]
  %v79 = vld [vmem:[%s1 + $0x1c] sm:$0xf]
  %v80 = vld [vmem:[%s1 + $0x20] sm:$0xf]
  %v81 = vld [vmem:[%s1 + $0x24] sm:$0xf]
  %v82 = vld [vmem:[%s1 + $0x28] sm:$0xf]
  %v83 = vld [vmem:[%s1 + $0x2c] sm:$0xf]
  %v84 = vld [vmem:[%s1 + $0x30] sm:$0xf]
  %v85 = vld [vmem:[%s1 + $0x34] sm:$0xf]
  %v86 = vld [vmem:[%s1 + $0x38] sm:$0xf]
  %v87 = vld [vmem:[%s1 + $0x3c] sm:$0xf]
  %v104 = vunpack.c.l.b16 %v56
  %v105 = vunpack.c.l.b16 %v57
  %v106 = vunpack.c.l.b16 %v58
  %v107 = vunpack.c.l.b16 %v59
  %v108 = vunpack.c.l.b16 %v60
  %v109 = vunpack.c.l.b16 %v61
  %v110 = vunpack.c.l.b16 %v62
  %v111 = vunpack.c.l.b16 %v63
  %v112 = vunpack.c.l.b16 %v64
  %v113 = vunpack.c.l.b16 %v65
  %v114 = vunpack.c.l.b16 %v66
  %v115 = vunpack.c.l.b16 %v67
  %v116 = vunpack.c.l.b16 %v68
  %v117 = vunpack.c.l.b16 %v69
  %v118 = vunpack.c.l.b16 %v70
  %v119 = vunpack.c.l.b16 %v71
  %v120 = vpack.c.b16 %v105, %v104
  %v121 = vpack.c.b16 %v107, %v106
  %v122 = vpack.c.b16 %v109, %v108
  %v123 = vpack.c.b16 %v111, %v110
  %v124 = vpack.c.b16 %v113, %v112
  %v125 = vpack.c.b16 %v115, %v114
  %v126 = vpack.c.b16 %v117, %v116
  %v127 = vpack.c.b16 %v119, %v118
  %v152 = vunpack.c.l.b16 %v72
  %v153 = vunpack.c.l.b16 %v73
  %v154 = vunpack.c.l.b16 %v74
  %v155 = vunpack.c.l.b16 %v75
  %v156 = vunpack.c.l.b16 %v76
  %v157 = vunpack.c.l.b16 %v77
  %v158 = vunpack.c.l.b16 %v78
  %v159 = vunpack.c.l.b16 %v79
  %v160 = vunpack.c.l.b16 %v80
  %v161 = vunpack.c.l.b16 %v81
  %v162 = vunpack.c.l.b16 %v82
  %v163 = vunpack.c.l.b16 %v83
  %v164 = vunpack.c.l.b16 %v84
  %v165 = vunpack.c.l.b16 %v85
  %v166 = vunpack.c.l.b16 %v86
  %v167 = vunpack.c.l.b16 %v87
  %v168 = vpack.c.b16 %v153, %v152
  %v169 = vpack.c.b16 %v155, %v154
  %v170 = vpack.c.b16 %v157, %v156
  %v171 = vpack.c.b16 %v159, %v158
  %v172 = vpack.c.b16 %v161, %v160
  %v173 = vpack.c.b16 %v163, %v162
  %v174 = vpack.c.b16 %v165, %v164
  %v175 = vpack.c.b16 %v167, %v166
  %184 = vmatpush.bf16.msra.mxu0 %v175
  %185 = vmatpush.bf16.msra.mxu0 %v174
  %186 = vmatpush.bf16.msra.mxu0 %v173
  %187 = vmatpush.bf16.msra.mxu0 %v172
  %188 = vmatpush.bf16.msra.mxu0 %v171
  %189 = vmatpush.bf16.msra.mxu0 %v170
  %190 = vmatpush.bf16.msra.mxu0 %v169
  %191 = vmatpush.bf16.msra.mxu0 %v168
  %192 = vmatmul.bf16.gmra.mxu0 %v120
  %v193 = vpop.f32.mrf.mxu0
  %v194 = vadd.f32 0.0, %v193
  %v195 = vpop.f32.mrf.mxu0
  %v196 = vadd.f32 0.0, %v195
  %197 = vmatmul.bf16.gmra.mxu0 %v121
  %v198 = vpop.f32.mrf.mxu0
  %v199 = vadd.f32 0.0, %v198
  %v200 = vpop.f32.mrf.mxu0
  %v201 = vadd.f32 0.0, %v200
  %202 = vmatmul.bf16.gmra.mxu0 %v122
  %v203 = vpop.f32.mrf.mxu0
  %v204 = vadd.f32 0.0, %v203
  %v205 = vpop.f32.mrf.mxu0
  %v206 = vadd.f32 0.0, %v205
  %207 = vmatmul.bf16.gmra.mxu0 %v123
  %v208 = vpop.f32.mrf.mxu0
  %v209 = vadd.f32 0.0, %v208
  %v210 = vpop.f32.mrf.mxu0
  %v211 = vadd.f32 0.0, %v210
  %212 = vmatmul.bf16.gmra.mxu0 %v124
  %v213 = vpop.f32.mrf.mxu0
  %v214 = vadd.f32 0.0, %v213
  %v215 = vpop.f32.mrf.mxu0
  %v216 = vadd.f32 0.0, %v215
  %217 = vmatmul.bf16.gmra.mxu0 %v125
  %v218 = vpop.f32.mrf.mxu0
  %v219 = vadd.f32 0.0, %v218
  %v220 = vpop.f32.mrf.mxu0
  %v221 = vadd.f32 0.0, %v220
  %222 = vmatmul.bf16.gmra.mxu0 %v126
  %v223 = vpop.f32.mrf.mxu0
  %v224 = vadd.f32 0.0, %v223
  %v225 = vpop.f32.mrf.mxu0
  %v226 = vadd.f32 0.0, %v225
  %227 = vmatmul.bf16.gmra.mxu0 %v127
  %v228 = vpop.f32.mrf.mxu0
  %v229 = vadd.f32 0.0, %v228
  %v230 = vpop.f32.mrf.mxu0
  %v231 = vadd.f32 0.0, %v230
  %232 = vdwg.mxu0
  %v233 = vadd.f32 %v40, %v194
  %v234 = vadd.f32 %v41, %v196
  %v235 = vadd.f32 %v42, %v199
  %v236 = vadd.f32 %v43, %v201
  %v237 = vadd.f32 %v44, %v204
  %v238 = vadd.f32 %v45, %v206
  %v239 = vadd.f32 %v46, %v209
  %v240 = vadd.f32 %v47, %v211
  %v241 = vadd.f32 %v48, %v214
  %v242 = vadd.f32 %v49, %v216
  %v243 = vadd.f32 %v50, %v219
  %v244 = vadd.f32 %v51, %v221
  %v245 = vadd.f32 %v52, %v224
  %v246 = vadd.f32 %v53, %v226
  %v247 = vadd.f32 %v54, %v229
  %v248 = vadd.f32 %v55, %v231
  %249 = vst [vmem:[#allocation2] sm:$0xff] %v233
  %250 = vst [vmem:[#allocation2 + $0x8] sm:$0xff] %v234
  %251 = vst [vmem:[#allocation2 + $0x10] sm:$0xff] %v235
  %252 = vst [vmem:[#allocation2 + $0x18] sm:$0xff] %v236
  %253 = vst [vmem:[#allocation2 + $0x20] sm:$0xff] %v237
  %254 = vst [vmem:[#allocation2 + $0x28] sm:$0xff] %v238
  %255 = vst [vmem:[#allocation2 + $0x30] sm:$0xff] %v239
  %256 = vst [vmem:[#allocation2 + $0x38] sm:$0xff] %v240
  %257 = vst [vmem:[#allocation2 + $0x40] sm:$0xff] %v241
  %258 = vst [vmem:[#allocation2 + $0x48] sm:$0xff] %v242
  %259 = vst [vmem:[#allocation2 + $0x50] sm:$0xff] %v243
  %260 = vst [vmem:[#allocation2 + $0x58] sm:$0xff] %v244
  %261 = vst [vmem:[#allocation2 + $0x60] sm:$0xff] %v245
  %262 = vst [vmem:[#allocation2 + $0x68] sm:$0xff] %v246
  %263 = vst [vmem:[#allocation2 + $0x70] sm:$0xff] %v247
  %264 = vst [vmem:[#allocation2 + $0x78] sm:$0xff] %v248
  // Predicated region
  $region26: #{sage_forward.11} parent=0 // pred_check
    %p265 = pneg %p20
  $region27: #{sage_forward.11} parent=0 // pred_check_branch
    %267 = sbr.rel (%p265) target = $region29
  $region28: #{sage_forward.11} parent=0 // pred_region
    %v268 = vld [vmem:[%s2] sm:$0xff]
    %v269 = vld [vmem:[%s2 + $0x8] sm:$0xff]
    %v270 = vld [vmem:[%s2 + $0x10] sm:$0xff]
    %v271 = vld [vmem:[%s2 + $0x18] sm:$0xff]
    %v272 = vld [vmem:[%s2 + $0x20] sm:$0xff]
    %v273 = vld [vmem:[%s2 + $0x28] sm:$0xff]
    %v274 = vld [vmem:[%s2 + $0x30] sm:$0xff]
    %v275 = vld [vmem:[%s2 + $0x38] sm:$0xff]
    %v276 = vld [vmem:[%s2 + $0x40] sm:$0xff]
    %v277 = vld [vmem:[%s2 + $0x48] sm:$0xff]
    %v278 = vld [vmem:[%s2 + $0x50] sm:$0xff]
    %v279 = vld [vmem:[%s2 + $0x58] sm:$0xff]
    %v280 = vld [vmem:[%s2 + $0x60] sm:$0xff]
    %v281 = vld [vmem:[%s2 + $0x68] sm:$0xff]
    %v282 = vld [vmem:[%s2 + $0x70] sm:$0xff]
    %v283 = vld [vmem:[%s2 + $0x78] sm:$0xff]
    %v284 = vld [vmem:[%s3] sm:$0xff]
    %v285 = vld [vmem:[%s3 + $0x8] sm:$0xff]
    %v286 = vld [vmem:[%s3 + $0x10] sm:$0xff]
    %v287 = vld [vmem:[%s3 + $0x18] sm:$0xff]
    %v288 = vld [vmem:[%s3 + $0x20] sm:$0xff]
    %v289 = vld [vmem:[%s3 + $0x28] sm:$0xff]
    %v290 = vld [vmem:[%s3 + $0x30] sm:$0xff]
    %v291 = vld [vmem:[%s3 + $0x38] sm:$0xff]
    %v292 = vld [vmem:[%s3 + $0x40] sm:$0xff]
    %v293 = vld [vmem:[%s3 + $0x48] sm:$0xff]
    %v294 = vld [vmem:[%s3 + $0x50] sm:$0xff]
    %v295 = vld [vmem:[%s3 + $0x58] sm:$0xff]
    %v296 = vld [vmem:[%s3 + $0x60] sm:$0xff]
    %v297 = vld [vmem:[%s3 + $0x68] sm:$0xff]
    %v298 = vld [vmem:[%s3 + $0x70] sm:$0xff]
    %v299 = vld [vmem:[%s3 + $0x78] sm:$0xff]
    %v300 = vld [vmem:[%s4] sm:$0x1]
    %v302 = vperm.slane %v300, 0
    %304 = vmatpush.msra.mxu0 %v299
    %305 = vmatpush.msra.mxu0 %v298
    %306 = vmatpush.msra.mxu0 %v297
    %307 = vmatpush.msra.mxu0 %v296
    %308 = vmatpush.msra.mxu0 %v295
    %309 = vmatpush.msra.mxu0 %v294
    %310 = vmatpush.msra.mxu0 %v293
    %311 = vmatpush.msra.mxu0 %v292
    %312 = vmatpush.msra.mxu0 %v291
    %313 = vmatpush.msra.mxu0 %v290
    %314 = vmatpush.msra.mxu0 %v289
    %315 = vmatpush.msra.mxu0 %v288
    %316 = vmatpush.msra.mxu0 %v287
    %317 = vmatpush.msra.mxu0 %v286
    %318 = vmatpush.msra.mxu0 %v285
    %319 = vmatpush.msra.mxu0 %v284
    %320 = vmatmul.f32.gmra.mxu0 %v268
    %v321 = vpop.f32.mrf.mxu0
    %v322 = vadd.f32 %v302, %v321
    %323 = vmatmul.f32.gmra.mxu0 %v269
    %v324 = vpop.f32.mrf.mxu0
    %v325 = vadd.f32 %v302, %v324
    %326 = vmatmul.f32.gmra.mxu0 %v270
    %v327 = vpop.f32.mrf.mxu0
    %v328 = vadd.f32 %v302, %v327
    %329 = vmatmul.f32.gmra.mxu0 %v271
    %v330 = vpop.f32.mrf.mxu0
    %v331 = vadd.f32 %v302, %v330
    %332 = vmatmul.f32.gmra.mxu0 %v272
    %v333 = vpop.f32.mrf.mxu0
    %v334 = vadd.f32 %v302, %v333
    %335 = vmatmul.f32.gmra.mxu0 %v273
    %v336 = vpop.f32.mrf.mxu0
    %v337 = vadd.f32 %v302, %v336
    %338 = vmatmul.f32.gmra.mxu0 %v274
    %v339 = vpop.f32.mrf.mxu0
    %v340 = vadd.f32 %v302, %v339
    %341 = vmatmul.f32.gmra.mxu0 %v275
    %v342 = vpop.f32.mrf.mxu0
    %v343 = vadd.f32 %v302, %v342
    %344 = vmatmul.f32.gmra.mxu0 %v276
    %v345 = vpop.f32.mrf.mxu0
    %v346 = vadd.f32 %v302, %v345
    %347 = vmatmul.f32.gmra.mxu0 %v277
    %v348 = vpop.f32.mrf.mxu0
    %v349 = vadd.f32 %v302, %v348
    %350 = vmatmul.f32.gmra.mxu0 %v278
    %v351 = vpop.f32.mrf.mxu0
    %v352 = vadd.f32 %v302, %v351
    %353 = vmatmul.f32.gmra.mxu0 %v279
    %v354 = vpop.f32.mrf.mxu0
    %v355 = vadd.f32 %v302, %v354
    %356 = vmatmul.f32.gmra.mxu0 %v280
    %v357 = vpop.f32.mrf.mxu0
    %v358 = vadd.f32 %v302, %v357
    %359 = vmatmul.f32.gmra.mxu0 %v281
    %v360 = vpop.f32.mrf.mxu0
    %v361 = vadd.f32 %v302, %v360
    %362 = vmatmul.f32.gmra.mxu0 %v282
    %v363 = vpop.f32.mrf.mxu0
    %v364 = vadd.f32 %v302, %v363
    %365 = vmatmul.f32.gmra.mxu0 %v283
    %v366 = vpop.f32.mrf.mxu0
    %v367 = vadd.f32 %v302, %v366
    %368 = vdwg.mxu0
    %v369 = vld [vmem:[#allocation2] sm:$0xff]
    %v370 = vld [vmem:[#allocation2 + $0x8] sm:$0xff]
    %v371 = vld [vmem:[#allocation2 + $0x10] sm:$0xff]
    %v372 = vld [vmem:[#allocation2 + $0x18] sm:$0xff]
    %v373 = vld [vmem:[#allocation2 + $0x20] sm:$0xff]
    %v374 = vld [vmem:[#allocation2 + $0x28] sm:$0xff]
    %v375 = vld [vmem:[#allocation2 + $0x30] sm:$0xff]
    %v376 = vld [vmem:[#allocation2 + $0x38] sm:$0xff]
    %v377 = vld [vmem:[#allocation2 + $0x40] sm:$0xff]
    %v378 = vld [vmem:[#allocation2 + $0x48] sm:$0xff]
    %v379 = vld [vmem:[#allocation2 + $0x50] sm:$0xff]
    %v380 = vld [vmem:[#allocation2 + $0x58] sm:$0xff]
    %v381 = vld [vmem:[#allocation2 + $0x60] sm:$0xff]
    %v382 = vld [vmem:[#allocation2 + $0x68] sm:$0xff]
    %v383 = vld [vmem:[#allocation2 + $0x70] sm:$0xff]
    %v384 = vld [vmem:[#allocation2 + $0x78] sm:$0xff]
    %v385 = vadd.f32 %v369, %v322
    %v386 = vadd.f32 %v370, %v325
    %v387 = vadd.f32 %v371, %v328
    %v388 = vadd.f32 %v372, %v331
    %v389 = vadd.f32 %v373, %v334
    %v390 = vadd.f32 %v374, %v337
    %v391 = vadd.f32 %v375, %v340
    %v392 = vadd.f32 %v376, %v343
    %v393 = vadd.f32 %v377, %v346
    %v394 = vadd.f32 %v378, %v349
    %v395 = vadd.f32 %v379, %v352
    %v396 = vadd.f32 %v380, %v355
    %v397 = vadd.f32 %v381, %v358
    %v398 = vadd.f32 %v382, %v361
    %v399 = vadd.f32 %v383, %v364
    %v400 = vadd.f32 %v384, %v367
    %401 = vst [vmem:[%s5] sm:$0xff] %v385
    %402 = vst [vmem:[%s5 + $0x8] sm:$0xff] %v386
    %403 = vst [vmem:[%s5 + $0x10] sm:$0xff] %v387
    %404 = vst [vmem:[%s5 + $0x18] sm:$0xff] %v388
    %405 = vst [vmem:[%s5 + $0x20] sm:$0xff] %v389
    %406 = vst [vmem:[%s5 + $0x28] sm:$0xff] %v390
    %407 = vst [vmem:[%s5 + $0x30] sm:$0xff] %v391
    %408 = vst [vmem:[%s5 + $0x38] sm:$0xff] %v392
    %409 = vst [vmem:[%s5 + $0x40] sm:$0xff] %v393
    %410 = vst [vmem:[%s5 + $0x48] sm:$0xff] %v394
    %411 = vst [vmem:[%s5 + $0x50] sm:$0xff] %v395
    %412 = vst [vmem:[%s5 + $0x58] sm:$0xff] %v396
    %413 = vst [vmem:[%s5 + $0x60] sm:$0xff] %v397
    %414 = vst [vmem:[%s5 + $0x68] sm:$0xff] %v398
    %415 = vst [vmem:[%s5 + $0x70] sm:$0xff] %v399
    %416 = vst [vmem:[%s5 + $0x78] sm:$0xff] %v400
  $region29: #{sage_forward.11} parent=0 // pred_fallthru
    _
  // Predicated region
  $region30: #{sage_forward.11} parent=0 // pred_check
    _
  $region31: #{sage_forward.11} parent=0 // pred_check_branch
    %418 = sbr.rel (0) target = $region33
  $region32: #{sage_forward.11} parent=0 // pred_region
    _
  $region33: #{sage_forward.11} parent=0 // pred_fallthru
    _
  // Predicated region
  $region34: #{sage_forward.11} parent=0 // pred_check
    _
  $region35: #{sage_forward.11} parent=0 // pred_check_branch
    %420 = sbr.rel (0) target = $region37
  $region36: #{sage_forward.11} parent=0 // pred_region
    _
  $region37: #{sage_forward.11} parent=0 // pred_fallthru
    _

</llo_original>
